<compile_context>
chip_gen: v5e
topology: v5e:2x2
jax: 0.10.0
libtpu: 0.0.40
codegen_flags: <defaults>
</compile_context>

<pallas_src>
import jax
import jax.numpy as jnp
from jax import lax
from jax.experimental import pallas as pl
from jax.experimental.pallas import tpu as pltpu


def _round_up(x, m):
    return ((x + m - 1) // m) * m


def linear_kernel(x_ref, w_ref, b_ref, o_ref):
    # x_ref: (TB, F) VMEM, w_ref: (1, F) VMEM, b_ref: (1,) SMEM,
    # o_ref: (1, 1, TB) VMEM (lane-dense output row).
    x = x_ref[...]                      # (TB, F)
    w = w_ref[...]                      # (1, F), lane-dense
    b = b_ref[0]                        # scalar bias from SMEM
    # GEMV contracted on F: (1,F) . (TB,F) -> (1,TB), f32 accumulation.
    # No (TB,F) temporary is materialized and the result is already lane-dense.
    y = lax.dot_general(
        w, x,
        dimension_numbers=(((1,), (1,)), ((), ())),
        preferred_element_type=jnp.float32,
    )                                   # (1, TB)
    o_ref[...] = (y + b).astype(o_ref.dtype).reshape(o_ref.shape)


def _choose_block_batch(batch, n_features, target_stage_bytes=2 << 20):
    """Pick the batch tile TB (rows per grid step), sized by padded VMEM bytes.

    Per-row VMEM cost: the x tile lane-pads n_features up to 128 and the
    (1,1,TB) output block sublane-pads 1 up to 8, so
        row_bytes = 4 * round_up(F, 128) + 8 * 4.
    Targeting ~2 MiB per stage (Pallas double-buffers -> ~4-5 MiB resident)
    is safe under every generation's default scoped VMEM (v5e 16 MiB,
    v6e/v7x 32 MiB) while being large enough to approach HBM roofline.
    """
    lane_f = _round_up(max(1, n_features), 128)
    row_bytes = 4 * lane_f + 8 * 4
    tb = max(8, target_stage_bytes // row_bytes)
    tb = (tb // 128) * 128 if tb >= 128 else (tb // 8) * 8
    tb = max(8, tb)

    # Never exceed the batch (rounded DOWN to a sublane multiple) so the only
    # ragged block is the standard partial *last* block; the caller pads
    # batches < 8 up to one sublane.
    batch_cap = max(8, (batch // 8) * 8)
    tb = min(tb, batch_cap)

    # v7x megacore: with dimension_semantics=("parallel",) keep >= 2 tiles on
    # non-trivial batches so both TensorCores get work (no-op on v5e/v6e).
    if batch >= 256 and pl.cdiv(batch, tb) < 2:
        tb = max(128, min(tb, _round_up(pl.cdiv(batch, 2), 128)))
    return tb


def _working_set_bytes(tb, n_features):
    """Padded VMEM footprint of the pipelined buffers (double-buffered)."""
    lane_f = _round_up(max(1, n_features), 128)
    x_buf = tb * lane_f * 4     # (TB, F) tile, F lane-padded to 128
    w_buf = 8 * lane_f * 4      # (1, F) weight, sublane-padded to 8
    o_buf = 8 * tb * 4          # (1, 1, TB) output block, sublane-padded to 8
    return 2 * (x_buf + w_buf + o_buf)


def _vmem_limit_bytes(working_set_bytes):
    """Generation-aware scoped-VMEM request (covers v5e's 16 MiB default)."""
    physical = 64 << 20  # conservative fallback (v7x per-TC VMEM)
    try:
        physical = int(getattr(pltpu.get_tpu_info(), "vmem_capacity_bytes",
                               physical))
    except Exception:
        pass
    want = max(32 << 20, 2 * working_set_bytes + (8 << 20))
    return int(min(want, physical // 2))


def linear_net_forward(x, weight, bias):
    """Pallas forward pass for LinearNet.

    x:      (batch, n_features) float32
    weight: (1, n_features) float32   (PyTorch nn.Linear layout, kept as-is)
    bias:   (1,) float32
    returns (batch, 1) float32  ==  x @ weight.T + bias
    """
    orig_batch, n_features = x.shape
    batch = orig_batch
    if batch < 8:
        # Tiny-batch edge case only: pad up to one sublane (<= 7 extra rows).
        x = jnp.pad(x, ((0, 8 - batch), (0, 0)))
        batch = 8

    tb = _choose_block_batch(batch, n_features)
    num_tiles = pl.cdiv(batch, tb)
    vmem_limit = _vmem_limit_bytes(_working_set_bytes(tb, n_features))

    out = pl.pallas_call(
        linear_kernel,
        # Lane-dense output slab: (num_tiles, 1, TB); ragged tail rows are
        # garbage and sliced off below.
        out_shape=jax.ShapeDtypeStruct((num_tiles, 1, tb), jnp.float32),
        grid_spec=pltpu.PrefetchScalarGridSpec(
            num_scalar_prefetch=0,
            grid=(num_tiles,),
            in_specs=[
                # x: batch-tiled, lane-dense feature axis; last block ragged.
                pl.BlockSpec((tb, n_features), lambda i: (i, 0)),
                # weight: pinned, resident across all batch tiles.
                # TODO(synk): pipeline_mode=pl.Buffered(1) would halve its
                # (sublane-padded) footprint for very wide n_features.
                pl.BlockSpec((1, n_features), lambda i: (0, 0)),
                # bias: single scalar in SMEM (untiled).
                pl.BlockSpec(memory_space=pltpu.MemorySpace.SMEM),
            ],
            out_specs=pl.BlockSpec((1, 1, tb), lambda i: (i, 0, 0)),
        ),
        compiler_params=pltpu.CompilerParams(
            # batch tiles are independent -> shard across TCs on v7x.
            dimension_semantics=("parallel",),
            vmem_limit_bytes=vmem_limit,
        ),
    )(x, weight, bias)

    # TODO(synk): for very wide n_features add a second ("arbitrary") feature
    # grid axis with an f32 scratch accumulator instead of shrinking TB to 8.
    # TODO(synk): for n_features << 128 the x tile is mostly lane padding;
    # fold features into lanes (or fall back to plain XLA) below a threshold.
    # TODO(synk): optionally stream x/weight as bf16 with f32 accumulation
    # (~2x on this HBM-read-bound kernel); changes input precision vs f32.
    return out.reshape(num_tiles * tb, 1)[:orig_batch]


if __name__ == "__main__":
    key = jax.random.PRNGKey(0)
    k_x, k_w = jax.random.split(key)

    batch = 16
    n_features = 2  # classic 2-feature linear regression from the chapter

    x = jax.random.normal(k_x, (batch, n_features), dtype=jnp.float32)
    # Mirrors init.normal_(weight, mean=0, std=0.01); init.constant_(bias, 0).
    weight = 0.01 * jax.random.normal(k_w, (1, n_features), dtype=jnp.float32)
    bias = jnp.zeros((1,), dtype=jnp.float32)

    # Exact-multiple batch.
    y = linear_net_forward(x, weight, bias)
    y = jax.block_until_ready(y)
    y_ref = x @ weight.T + bias
    assert y.shape == (batch, 1)
    assert jnp.allclose(y, y_ref, atol=1e-5, rtol=1e-5)

    # Ragged batch (exercises the partial last block, no whole-array pad).
    xr = x[:13]
    yr = jax.block_until_ready(linear_net_forward(xr, weight, bias))
    assert yr.shape == (13, 1)
    assert jnp.allclose(yr, xr @ weight.T + bias, atol=1e-5, rtol=1e-5)

    print("KERNEL_OK")
</pallas_src>

<mosaic_0001>
module attributes {stable_mosaic.version = 11 : i64} {
  func.func @linear_kernel(%arg0: i32, %arg1: memref<16x2xf32, #tpu.memory_space<vmem>>, %arg2: memref<1x2xf32, #tpu.memory_space<vmem>>, %arg3: memref<1xf32, #tpu.memory_space<smem>>, %arg4: memref<1x1x16xf32, #tpu.memory_space<vmem>>) attributes {dimension_semantics = [#tpu.dimension_semantics<parallel>], iteration_bounds = array<i64: 1>, scalar_prefetch = 0 : i64, scratch_operands = 0 : i64, tpu.core_type = #tpu.core_type<tc>, window_params = [{transform_indices = @transform_0, window_bounds = array<i64: 16, 2>}, {pipeline_mode = #tpu.pipeline_mode<synchronous>, transform_indices = @transform_1, window_bounds = array<i64: 1, 2>}, {transform_indices = @transform_2, window_bounds = array<i64: 1>}, {transform_indices = @transform_3, window_bounds = array<i64: 1, 1, 16>}]} {
    %c0 = arith.constant 0 : index
    %c0_0 = arith.constant 0 : index
    %0 = vector.load %arg1[%c0, %c0_0] : memref<16x2xf32, #tpu.memory_space<vmem>>, vector<16x2xf32>
    %c0_1 = arith.constant 0 : index
    %c0_2 = arith.constant 0 : index
    %1 = vector.load %arg2[%c0_1, %c0_2] : memref<1x2xf32, #tpu.memory_space<vmem>>, vector<1x2xf32>
    %c0_3 = arith.constant 0 : index
    %2 = memref.load %arg3[%c0_3] : memref<1xf32, #tpu.memory_space<smem>>
    %cst = arith.constant dense<0.000000e+00> : vector<1x16xf32>
    %3 = tpu.matmul %1, %0, %cst {dimension_numbers = #tpu.dot_dimension_numbers<[1], [1], [0], [0], [0, 0, 1, 0], [], []>} : vector<1x2xf32>, vector<16x2xf32>, vector<1x16xf32> -> vector<1x16xf32>
    %4 = vector.broadcast %2 : f32 to vector<1x16xf32>
    %5 = arith.addf %3, %4 : vector<1x16xf32>
    %6 = vector.shape_cast %5 : vector<1x16xf32> to vector<1x1x16xf32>
    %c0_4 = arith.constant 0 : index
    %c0_5 = arith.constant 0 : index
    %c0_6 = arith.constant 0 : index
    %7 = vector.load %arg4[%c0_4, %c0_5, %c0_6] : memref<1x1x16xf32, #tpu.memory_space<vmem>>, vector<1x1x16xf32>
    tpu.vector_store %arg4[%c0_4, %c0_5, %c0_6], %6 {strides = array<i32>} : memref<1x1x16xf32, #tpu.memory_space<vmem>>, vector<1x1x16xf32>,
    return
  }
  func.func @transform_0(%arg0: i32) -> (i32, i32) {
    %c0_i32 = arith.constant 0 : i32
    %c0_i32_0 = arith.constant 0 : i32
    return %arg0, %c0_i32 : i32, i32
  }
  func.func @transform_1(%arg0: i32) -> (i32, i32) {
    %c0_i32 = arith.constant 0 : i32
    %c0_i32_0 = arith.constant 0 : i32
    %c0_i32_1 = arith.constant 0 : i32
    return %c0_i32, %c0_i32_0 : i32, i32
  }
  func.func @transform_2(%arg0: i32) -> i32 {
    %c0_i32 = arith.constant 0 : i32
    %c0_i32_0 = arith.constant 0 : i32
    return %c0_i32 : i32
  }
  func.func @transform_3(%arg0: i32) -> (i32, i32, i32) {
    %c0_i32 = arith.constant 0 : i32
    %c0_i32_0 = arith.constant 0 : i32
    %c0_i32_1 = arith.constant 0 : i32
    return %arg0, %c0_i32, %c0_i32_0 : i32, i32, i32
  }
}

</mosaic_0001>

<llo_original>
// kernel: tpu_custom_call.1
$region0: #{tpu_custom_call.1}
  #allocation0 [shape = 'u32[]', space=smem, size = 0x4, offset = 0x4, fixed_abs, tag = 'smem constant byte address 0x4 - core index']
  #allocation1 [shape = 'u32[72,128]{1,0:T(1,128)}', space=vmem, size = 0x9000, scoped, tag = 'internal scratch']
  #allocation2 [shape = 'f32[1]{0:T(128)S(6)}', space=smem, size = 0x200, scoped, tag = 'scoped memory for tpu_custom_call.1']
  %s0 = inlined_call_operand.vmem [shape: f32[16,2], index: 0, kind: input, shape index: {}]
  %s1 = inlined_call_operand.vmem [shape: f32[1,2], index: 1, kind: input, shape index: {}]
  %s2 = inlined_call_operand.<no memory space> [shape: f32[1], index: 2, kind: input, shape index: {}]
  %s3 = inlined_call_operand.hbm [shape: f32[1,1,16], index: 3, kind: output, shape index: {}]
  %s4 = sld [smem:[#allocation0]]
  $region22: #{tpu_custom_call.1} parent=0
    _
  %s6 = ssub.s32 1, %s4
  %s7 = scalar_select 0, %s6, %s4
  %8 = sst [smem:[#allocation2]] %s2
  $region1: #{tpu_custom_call.1} parent=0
    #allocation3 [shape = 'u8[512]{0}', space=vmem, size = 0x400, scoped, tag = 'output window, operand 0, single buffered']
    #allocation4 [shape = 's32[1]{0}', space=sflag, size = 0x4, scoped, tag = 'scoped memory for tpu_custom_call.1']
    %9 = vsyncpa [#allocation4], 0
    // Predicated region
    $region2: #{tpu_custom_call.1} parent=1 // pred_check
      _
    $region3: #{tpu_custom_call.1} parent=1 // pred_check_branch
      %11 = sbr.rel (0) target = $region5
    $region4: #{tpu_custom_call.1} parent=1 // pred_region
      _
    $region5: #{tpu_custom_call.1} parent=1 // pred_fallthru
      _
    // Predicated region
    $region6: #{tpu_custom_call.1} parent=1 // pred_check
      _
    $region7: #{tpu_custom_call.1} parent=1 // pred_check_branch
      %13 = sbr.rel (0) target = $region9
    $region8: #{tpu_custom_call.1} parent=1 // pred_region
      _
    $region9: #{tpu_custom_call.1} parent=1 // pred_fallthru
      _
    // Predicated region
    $region10: #{tpu_custom_call.1} parent=1 // pred_check
      _
    $region11: #{tpu_custom_call.1} parent=1 // pred_check_branch
      %15 = sbr.rel (0) target = $region13
    $region12: #{tpu_custom_call.1} parent=1 // pred_region
      _
    $region13: #{tpu_custom_call.1} parent=1 // pred_fallthru
      _
    %v16 = vld [vmem:[%s0] sm:$0xff]
    %v17 = vld [vmem:[%s0 + $0x8] sm:$0xff]
    %v18 = vld [vmem:[%s1] sm:$0x1]
    %s19 = sld [smem:[#allocation2]]
    %v20 = vstv %s19
    %vm21 = vcmask 15360
    %v23 = vsel %vm21, %v18, 0
    %v26 = vsel %vm21, %v16, 0
    %v29 = vsel %vm21, %v17, 0
    %31 = vmatpush.xpose.msra.mxu0 0.0
    %32 = vmatpush.xpose.msra.mxu0 0.0
    %33 = vmatpush.xpose.msra.mxu0 0.0
    %34 = vmatpush.xpose.msra.mxu0 0.0
    %35 = vmatpush.xpose.msra.mxu0 0.0
    %36 = vmatpush.xpose.msra.mxu0 0.0
    %37 = vmatpush.xpose.msra.mxu0 0.0
    %38 = vmatpush.xpose.msra.mxu0 0.0
    %39 = vmatpush.xpose.msra.mxu0 0.0
    %40 = vmatpush.xpose.msra.mxu0 0.0
    %41 = vmatpush.xpose.msra.mxu0 0.0
    %42 = vmatpush.xpose.msra.mxu0 0.0
    %43 = vmatpush.xpose.msra.mxu0 0.0
    %44 = vmatpush.xpose.msra.mxu0 0.0
    %45 = vmatpush.xpose.msra.mxu0 %v29
    %46 = vmatpush.xpose.msra.mxu0 %v26
    %47 = vmatmul.f32.gmra.mxu0 %v23
    %v48 = vpop.f32.mrf.mxu0
    %v49 = vadd.f32 %v20, %v48
    %50 = vdwg.mxu0
    %vm51 = vcmask 122880
    %52 = vst.msk [vmem:[#allocation3] sm:$0x1] %vm51, %v49
    // Predicated region
    $region14: #{tpu_custom_call.1} parent=1 // pred_check
      _
    $region15: #{tpu_custom_call.1} parent=1 // pred_check_branch
      %54 = sbr.rel (0) target = $region17
    $region16: #{tpu_custom_call.1} parent=1 // pred_region
      %56 = vsyncadd [#allocation4], 0
      %s58 = sshll.u32 [#allocation3], 4
      %s59 = int_to_ptr.vmem [resolvable:$true] %s58
      %s60 = sshll.u32 %s3, 4
      %s61 = int_to_ptr.hbm [resolvable:$true] %s60
      %63 = dma.vmem_to_hbm [thread:$0]  %s59, 16, %s61, [#allocation4]
    $region17: #{tpu_custom_call.1} parent=1 // pred_fallthru
      _
    // Predicated region
    $region18: #{tpu_custom_call.1} parent=1 // pred_check
      _
    $region19: #{tpu_custom_call.1} parent=1 // pred_check_branch
      %65 = sbr.rel (0) target = $region21
    $region20: #{tpu_custom_call.1} parent=1 // pred_region
      %67 = dma.done [#allocation4], 16
    $region21: #{tpu_custom_call.1} parent=1 // pred_fallthru
      _
    %68 = vsyncpa [#allocation4], 1

</llo_original>
